<compile_context>
chip_gen: v7x
topology: tpu7x:2x2x1
jax: 0.10.0
libtpu: 0.0.40
codegen_flags: <defaults>
</compile_context>

<pallas_src>
import functools
import math

import numpy as np

import jax
import jax.numpy as jnp
from jax.experimental import pallas as pl
from jax.experimental.pallas import tpu as pltpu

LANES = 128            # vreg lane width
MAX_TILE_ROWS = 4096   # 4096 x 128 x f32 = 2 MiB per block


def _cdiv(a, b):
    return -(-a // b)


def _round_up(a, b):
    return _cdiv(a, b) * b


def _single_layer_kernel(x_ref, b_pos_ref, b_neg_ref, o_ref, *, n_pos, n_neg, gain):
    """x_ref/o_ref: (tile_rows, 128) f32 VMEM.  b_*_ref: (w,) f32 SMEM."""
    x = x_ref[...]
    zero = jnp.zeros_like(x)
    # Four independent accumulator chains (pos/neg x even/odd) so the unrolled
    # add chain does not serialize the 4-slot VALU.
    acc = [zero, zero, zero, zero]
    # a_r is folded into which group b_r landed in, so each term is just
    # add + max + add (no vmul).  b_*_ref[r] is an SMEM scalar read, lowering to
    # scalar-operand VPU ops (no per-term vector broadcast, no vreg pressure).
    for r in range(n_pos):
        acc[r & 1] = acc[r & 1] + jnp.maximum(x + b_pos_ref[r], 0.0)
    for r in range(n_neg):
        acc[2 + (r & 1)] = acc[2 + (r & 1)] + jnp.maximum(x + b_neg_ref[r], 0.0)
    # Apply the 1/sqrt(width) gain once per tile element, not once per term.
    o_ref[...] = gain * ((acc[0] + acc[1]) - (acc[2] + acc[3]))


def single_layer_simple(x, b, a, gain, *, max_tile_rows=MAX_TILE_ROWS):
    """x: (N, 1) f32, b: (width,), a: (width,) frozen in {-1,+1} -> (N, 1) f32."""
    n = int(x.shape[0])

    # ---- init-time (host) parameter prep: sign-partition b by a_r in {-1,+1}.
    # a_r is frozen at module init, so this split is static and done once.
    a_np = np.asarray(a, np.float32).reshape(-1)
    b_np = np.asarray(b, np.float32).reshape(-1)
    b_pos = b_np[a_np > 0]
    b_neg = b_np[a_np < 0]
    n_pos, n_neg = int(b_pos.size), int(b_neg.size)
    # SMEM operands must be non-empty; a zero-width group is never indexed.
    b_pos_j = jnp.asarray(b_pos if n_pos else np.zeros((1,), np.float32))
    b_neg_j = jnp.asarray(b_neg if n_neg else np.zeros((1,), np.float32))

    # ---- lane-dense slab view of x (no full-slab pad, no output slice).
    x_flat = jnp.asarray(x, jnp.float32).reshape(-1)
    n_lanes_padded = _round_up(n, LANES)
    lane_ragged = n_lanes_padded != n
    if lane_ragged:
        # TODO(synk): a ragged lane tail (N % 128 != 0) still costs one pad and
        # one slice copy; callers that keep N a multiple of 128 take the
        # zero-copy path end to end.
        x_flat = jnp.pad(x_flat, (0, n_lanes_padded - n))
    rows = n_lanes_padded // LANES
    x2d = x_flat.reshape(rows, LANES)

    # ---- row tiling: (8,128)-aligned blocks; a ragged last row tile is masked
    # by Pallas boundary handling (no pre-padding of rows).
    if rows <= 8:
        tile_rows = rows                        # block == full array (legal)
    else:
        tile_rows = min(max_tile_rows, _round_up(rows, 8))
        if _cdiv(rows, tile_rows) < 2:
            # Ensure >= 2 row tiles so the "parallel" grid axis can be split
            # across the 2 TensorCores on v7x (no-op on v5e/v6e).
            tile_rows = max(8, _round_up(_cdiv(rows, 2), 8))
    num_tiles = _cdiv(rows, tile_rows)

    kernel = functools.partial(
        _single_layer_kernel, n_pos=n_pos, n_neg=n_neg, gain=float(gain))

    out2d = pl.pallas_call(
        kernel,
        out_shape=jax.ShapeDtypeStruct((rows, LANES), jnp.float32),
        grid=(num_tiles,),
        in_specs=[
            pl.BlockSpec((tile_rows, LANES), lambda i: (i, 0)),
            pl.BlockSpec(memory_space=pltpu.MemorySpace.SMEM),
            pl.BlockSpec(memory_space=pltpu.MemorySpace.SMEM),
        ],
        out_specs=pl.BlockSpec((tile_rows, LANES), lambda i: (i, 0)),
        compiler_params=pltpu.CompilerParams(
            dimension_semantics=("parallel",),
        ),
        cost_estimate=pl.CostEstimate(
            # add + max + add per term, plus combine/sub/gain per element.
            flops=(3 * (n_pos + n_neg) + 4) * rows * LANES,
            transcendentals=0,
            bytes_accessed=8 * rows * LANES + 4 * (n_pos + n_neg),
        ),
    )(x2d, b_pos_j, b_neg_j)

    if lane_ragged:
        return out2d.reshape(-1)[:n].reshape(n, 1)
    return out2d.reshape(n, 1)


if __name__ == "__main__":
    width = 32
    n = 1280                      # 10 lane-rows -> 2 row tiles, last one ragged
    gain = 1.0 / math.sqrt(width)

    key = jax.random.PRNGKey(0)
    k_x, k_b, k_a = jax.random.split(key, 3)

    # Batch of scalar inputs, shape (N, 1), as the module's forward expects.
    x = jax.random.normal(k_x, (n, 1), dtype=jnp.float32)

    # Parameters matching the module's __init__ semantics:
    #   l1.weight = 1.0 (implicit: x*1 + b_r), l1.bias b_r ~ U(-1, 1) (fan_in=1),
    #   l2.weight a_r in {-1, +1} from Bernoulli(0.5), frozen.
    b = jax.random.uniform(k_b, (width,), dtype=jnp.float32, minval=-1.0, maxval=1.0)
    a = jax.random.bernoulli(k_a, 0.5, (width,)).astype(jnp.float32) * 2.0 - 1.0

    out = single_layer_simple(x, b, a, gain)
    out = jax.block_until_ready(out)

    # Pure-JAX reference: gain * sum_r a_r * relu(x + b_r)
    ref = gain * jnp.sum(jnp.maximum(x + b[None, :], 0.0) * a[None, :],
                         axis=1, keepdims=True)
    assert out.shape == (n, 1)
    err = float(jnp.max(jnp.abs(out - ref)))
    assert jnp.allclose(out, ref, atol=1e-5, rtol=1e-5), err

    print("KERNEL_OK")
</pallas_src>

<mosaic_0001>
module attributes {stable_mosaic.version = 11 : i64} {
  func.func @_single_layer_kernel(%arg0: i32, %arg1: memref<8x128xf32, #tpu.memory_space<vmem>>, %arg2: memref<17xf32, #tpu.memory_space<smem>>, %arg3: memref<15xf32, #tpu.memory_space<smem>>, %arg4: memref<8x128xf32, #tpu.memory_space<vmem>>) attributes {dimension_semantics = [#tpu.dimension_semantics<parallel>], iteration_bounds = array<i64: 2>, scalar_prefetch = 0 : i64, scratch_operands = 0 : i64, tpu.core_type = #tpu.core_type<tc>, window_params = [{transform_indices = @transform_0, window_bounds = array<i64: 8, 128>}, {transform_indices = @transform_1, window_bounds = array<i64: 17>}, {transform_indices = @transform_2, window_bounds = array<i64: 15>}, {transform_indices = @transform_3, window_bounds = array<i64: 8, 128>}]} {
    %c0 = arith.constant 0 : index
    %c0_0 = arith.constant 0 : index
    %0 = vector.load %arg1[%c0, %c0_0] : memref<8x128xf32, #tpu.memory_space<vmem>>, vector<8x128xf32>
    %cst = arith.constant 0.000000e+00 : f32
    %1 = vector.broadcast %cst : f32 to vector<8x128xf32>
    %c0_1 = arith.constant 0 : index
    %2 = memref.load %arg2[%c0_1] : memref<17xf32, #tpu.memory_space<smem>>
    %3 = vector.broadcast %2 : f32 to vector<8x128xf32>
    %4 = arith.addf %0, %3 : vector<8x128xf32>
    %cst_2 = arith.constant 0.000000e+00 : f32
    %5 = vector.broadcast %cst_2 : f32 to vector<8x128xf32>
    %6 = arith.maximumf %4, %5 : vector<8x128xf32>
    %7 = arith.addf %1, %6 : vector<8x128xf32>
    %c1 = arith.constant 1 : index
    %8 = memref.load %arg2[%c1] : memref<17xf32, #tpu.memory_space<smem>>
    %9 = vector.broadcast %8 : f32 to vector<8x128xf32>
    %10 = arith.addf %0, %9 : vector<8x128xf32>
    %cst_3 = arith.constant 0.000000e+00 : f32
    %11 = vector.broadcast %cst_3 : f32 to vector<8x128xf32>
    %12 = arith.maximumf %10, %11 : vector<8x128xf32>
    %13 = arith.addf %1, %12 : vector<8x128xf32>
    %c2 = arith.constant 2 : index
    %14 = memref.load %arg2[%c2] : memref<17xf32, #tpu.memory_space<smem>>
    %15 = vector.broadcast %14 : f32 to vector<8x128xf32>
    %16 = arith.addf %0, %15 : vector<8x128xf32>
    %cst_4 = arith.constant 0.000000e+00 : f32
    %17 = vector.broadcast %cst_4 : f32 to vector<8x128xf32>
    %18 = arith.maximumf %16, %17 : vector<8x128xf32>
    %19 = arith.addf %7, %18 : vector<8x128xf32>
    %c3 = arith.constant 3 : index
    %20 = memref.load %arg2[%c3] : memref<17xf32, #tpu.memory_space<smem>>
    %21 = vector.broadcast %20 : f32 to vector<8x128xf32>
    %22 = arith.addf %0, %21 : vector<8x128xf32>
    %cst_5 = arith.constant 0.000000e+00 : f32
    %23 = vector.broadcast %cst_5 : f32 to vector<8x128xf32>
    %24 = arith.maximumf %22, %23 : vector<8x128xf32>
    %25 = arith.addf %13, %24 : vector<8x128xf32>
    %c4 = arith.constant 4 : index
    %26 = memref.load %arg2[%c4] : memref<17xf32, #tpu.memory_space<smem>>
    %27 = vector.broadcast %26 : f32 to vector<8x128xf32>
    %28 = arith.addf %0, %27 : vector<8x128xf32>
    %cst_6 = arith.constant 0.000000e+00 : f32
    %29 = vector.broadcast %cst_6 : f32 to vector<8x128xf32>
    %30 = arith.maximumf %28, %29 : vector<8x128xf32>
    %31 = arith.addf %19, %30 : vector<8x128xf32>
    %c5 = arith.constant 5 : index
    %32 = memref.load %arg2[%c5] : memref<17xf32, #tpu.memory_space<smem>>
    %33 = vector.broadcast %32 : f32 to vector<8x128xf32>
    %34 = arith.addf %0, %33 : vector<8x128xf32>
    %cst_7 = arith.constant 0.000000e+00 : f32
    %35 = vector.broadcast %cst_7 : f32 to vector<8x128xf32>
    %36 = arith.maximumf %34, %35 : vector<8x128xf32>
    %37 = arith.addf %25, %36 : vector<8x128xf32>
    %c6 = arith.constant 6 : index
    %38 = memref.load %arg2[%c6] : memref<17xf32, #tpu.memory_space<smem>>
    %39 = vector.broadcast %38 : f32 to vector<8x128xf32>
    %40 = arith.addf %0, %39 : vector<8x128xf32>
    %cst_8 = arith.constant 0.000000e+00 : f32
    %41 = vector.broadcast %cst_8 : f32 to vector<8x128xf32>
    %42 = arith.maximumf %40, %41 : vector<8x128xf32>
    %43 = arith.addf %31, %42 : vector<8x128xf32>
    %c7 = arith.constant 7 : index
    %44 = memref.load %arg2[%c7] : memref<17xf32, #tpu.memory_space<smem>>
    %45 = vector.broadcast %44 : f32 to vector<8x128xf32>
    %46 = arith.addf %0, %45 : vector<8x128xf32>
    %cst_9 = arith.constant 0.000000e+00 : f32
    %47 = vector.broadcast %cst_9 : f32 to vector<8x128xf32>
    %48 = arith.maximumf %46, %47 : vector<8x128xf32>
    %49 = arith.addf %37, %48 : vector<8x128xf32>
    %c8 = arith.constant 8 : index
    %50 = memref.load %arg2[%c8] : memref<17xf32, #tpu.memory_space<smem>>
    %51 = vector.broadcast %50 : f32 to vector<8x128xf32>
    %52 = arith.addf %0, %51 : vector<8x128xf32>
    %cst_10 = arith.constant 0.000000e+00 : f32
    %53 = vector.broadcast %cst_10 : f32 to vector<8x128xf32>
    %54 = arith.maximumf %52, %53 : vector<8x128xf32>
    %55 = arith.addf %43, %54 : vector<8x128xf32>
    %c9 = arith.constant 9 : index
    %56 = memref.load %arg2[%c9] : memref<17xf32, #tpu.memory_space<smem>>
    %57 = vector.broadcast %56 : f32 to vector<8x128xf32>
    %58 = arith.addf %0, %57 : vector<8x128xf32>
    %cst_11 = arith.constant 0.000000e+00 : f32
    %59 = vector.broadcast %cst_11 : f32 to vector<8x128xf32>
    %60 = arith.maximumf %58, %59 : vector<8x128xf32>
    %61 = arith.addf %49, %60 : vector<8x128xf32>
    %c10 = arith.constant 10 : index
    %62 = memref.load %arg2[%c10] : memref<17xf32, #tpu.memory_space<smem>>
    %63 = vector.broadcast %62 : f32 to vector<8x128xf32>
    %64 = arith.addf %0, %63 : vector<8x128xf32>
    %cst_12 = arith.constant 0.000000e+00 : f32
    %65 = vector.broadcast %cst_12 : f32 to vector<8x128xf32>
    %66 = arith.maximumf %64, %65 : vector<8x128xf32>
    %67 = arith.addf %55, %66 : vector<8x128xf32>
    %c11 = arith.constant 11 : index
    %68 = memref.load %arg2[%c11] : memref<17xf32, #tpu.memory_space<smem>>
    %69 = vector.broadcast %68 : f32 to vector<8x128xf32>
    %70 = arith.addf %0, %69 : vector<8x128xf32>
    %cst_13 = arith.constant 0.000000e+00 : f32
    %71 = vector.broadcast %cst_13 : f32 to vector<8x128xf32>
    %72 = arith.maximumf %70, %71 : vector<8x128xf32>
    %73 = arith.addf %61, %72 : vector<8x128xf32>
    %c12 = arith.constant 12 : index
    %74 = memref.load %arg2[%c12] : memref<17xf32, #tpu.memory_space<smem>>
    %75 = vector.broadcast %74 : f32 to vector<8x128xf32>
    %76 = arith.addf %0, %75 : vector<8x128xf32>
    %cst_14 = arith.constant 0.000000e+00 : f32
    %77 = vector.broadcast %cst_14 : f32 to vector<8x128xf32>
    %78 = arith.maximumf %76, %77 : vector<8x128xf32>
    %79 = arith.addf %67, %78 : vector<8x128xf32>
    %c13 = arith.constant 13 : index
    %80 = memref.load %arg2[%c13] : memref<17xf32, #tpu.memory_space<smem>>
    %81 = vector.broadcast %80 : f32 to vector<8x128xf32>
    %82 = arith.addf %0, %81 : vector<8x128xf32>
    %cst_15 = arith.constant 0.000000e+00 : f32
    %83 = vector.broadcast %cst_15 : f32 to vector<8x128xf32>
    %84 = arith.maximumf %82, %83 : vector<8x128xf32>
    %85 = arith.addf %73, %84 : vector<8x128xf32>
    %c14 = arith.constant 14 : index
    %86 = memref.load %arg2[%c14] : memref<17xf32, #tpu.memory_space<smem>>
    %87 = vector.broadcast %86 : f32 to vector<8x128xf32>
    %88 = arith.addf %0, %87 : vector<8x128xf32>
    %cst_16 = arith.constant 0.000000e+00 : f32
    %89 = vector.broadcast %cst_16 : f32 to vector<8x128xf32>
    %90 = arith.maximumf %88, %89 : vector<8x128xf32>
    %91 = arith.addf %79, %90 : vector<8x128xf32>
    %c15 = arith.constant 15 : index
    %92 = memref.load %arg2[%c15] : memref<17xf32, #tpu.memory_space<smem>>
    %93 = vector.broadcast %92 : f32 to vector<8x128xf32>
    %94 = arith.addf %0, %93 : vector<8x128xf32>
    %cst_17 = arith.constant 0.000000e+00 : f32
    %95 = vector.broadcast %cst_17 : f32 to vector<8x128xf32>
    %96 = arith.maximumf %94, %95 : vector<8x128xf32>
    %97 = arith.addf %85, %96 : vector<8x128xf32>
    %c16 = arith.constant 16 : index
    %98 = memref.load %arg2[%c16] : memref<17xf32, #tpu.memory_space<smem>>
    %99 = vector.broadcast %98 : f32 to vector<8x128xf32>
    %100 = arith.addf %0, %99 : vector<8x128xf32>
    %cst_18 = arith.constant 0.000000e+00 : f32
    %101 = vector.broadcast %cst_18 : f32 to vector<8x128xf32>
    %102 = arith.maximumf %100, %101 : vector<8x128xf32>
    %103 = arith.addf %91, %102 : vector<8x128xf32>
    %c0_19 = arith.constant 0 : index
    %104 = memref.load %arg3[%c0_19] : memref<15xf32, #tpu.memory_space<smem>>
    %105 = vector.broadcast %104 : f32 to vector<8x128xf32>
    %106 = arith.addf %0, %105 : vector<8x128xf32>
    %cst_20 = arith.constant 0.000000e+00 : f32
    %107 = vector.broadcast %cst_20 : f32 to vector<8x128xf32>
    %108 = arith.maximumf %106, %107 : vector<8x128xf32>
    %109 = arith.addf %1, %108 : vector<8x128xf32>
    %c1_21 = arith.constant 1 : index
    %110 = memref.load %arg3[%c1_21] : memref<15xf32, #tpu.memory_space<smem>>
    %111 = vector.broadcast %110 : f32 to vector<8x128xf32>
    %112 = arith.addf %0, %111 : vector<8x128xf32>
    %cst_22 = arith.constant 0.000000e+00 : f32
    %113 = vector.broadcast %cst_22 : f32 to vector<8x128xf32>
    %114 = arith.maximumf %112, %113 : vector<8x128xf32>
    %115 = arith.addf %1, %114 : vector<8x128xf32>
    %c2_23 = arith.constant 2 : index
    %116 = memref.load %arg3[%c2_23] : memref<15xf32, #tpu.memory_space<smem>>
    %117 = vector.broadcast %116 : f32 to vector<8x128xf32>
    %118 = arith.addf %0, %117 : vector<8x128xf32>
    %cst_24 = arith.constant 0.000000e+00 : f32
    %119 = vector.broadcast %cst_24 : f32 to vector<8x128xf32>
    %120 = arith.maximumf %118, %119 : vector<8x128xf32>
    %121 = arith.addf %109, %120 : vector<8x128xf32>
    %c3_25 = arith.constant 3 : index
    %122 = memref.load %arg3[%c3_25] : memref<15xf32, #tpu.memory_space<smem>>
    %123 = vector.broadcast %122 : f32 to vector<8x128xf32>
    %124 = arith.addf %0, %123 : vector<8x128xf32>
    %cst_26 = arith.constant 0.000000e+00 : f32
    %125 = vector.broadcast %cst_26 : f32 to vector<8x128xf32>
    %126 = arith.maximumf %124, %125 : vector<8x128xf32>
    %127 = arith.addf %115, %126 : vector<8x128xf32>
    %c4_27 = arith.constant 4 : index
    %128 = memref.load %arg3[%c4_27] : memref<15xf32, #tpu.memory_space<smem>>
    %129 = vector.broadcast %128 : f32 to vector<8x128xf32>
    %130 = arith.addf %0, %129 : vector<8x128xf32>
    %cst_28 = arith.constant 0.000000e+00 : f32
    %131 = vector.broadcast %cst_28 : f32 to vector<8x128xf32>
    %132 = arith.maximumf %130, %131 : vector<8x128xf32>
    %133 = arith.addf %121, %132 : vector<8x128xf32>
    %c5_29 = arith.constant 5 : index
    %134 = memref.load %arg3[%c5_29] : memref<15xf32, #tpu.memory_space<smem>>
    %135 = vector.broadcast %134 : f32 to vector<8x128xf32>
    %136 = arith.addf %0, %135 : vector<8x128xf32>
    %cst_30 = arith.constant 0.000000e+00 : f32
    %137 = vector.broadcast %cst_30 : f32 to vector<8x128xf32>
    %138 = arith.maximumf %136, %137 : vector<8x128xf32>
    %139 = arith.addf %127, %138 : vector<8x128xf32>
    %c6_31 = arith.constant 6 : index
    %140 = memref.load %arg3[%c6_31] : memref<15xf32, #tpu.memory_space<smem>>
    %141 = vector.broadcast %140 : f32 to vector<8x128xf32>
    %142 = arith.addf %0, %141 : vector<8x128xf32>
    %cst_32 = arith.constant 0.000000e+00 : f32
    %143 = vector.broadcast %cst_32 : f32 to vector<8x128xf32>
    %144 = arith.maximumf %142, %143 : vector<8x128xf32>
    %145 = arith.addf %133, %144 : vector<8x128xf32>
    %c7_33 = arith.constant 7 : index
    %146 = memref.load %arg3[%c7_33] : memref<15xf32, #tpu.memory_space<smem>>
    %147 = vector.broadcast %146 : f32 to vector<8x128xf32>
    %148 = arith.addf %0, %147 : vector<8x128xf32>
    %cst_34 = arith.constant 0.000000e+00 : f32
    %149 = vector.broadcast %cst_34 : f32 to vector<8x128xf32>
    %150 = arith.maximumf %148, %149 : vector<8x128xf32>
    %151 = arith.addf %139, %150 : vector<8x128xf32>
    %c8_35 = arith.constant 8 : index
    %152 = memref.load %arg3[%c8_35] : memref<15xf32, #tpu.memory_space<smem>>
    %153 = vector.broadcast %152 : f32 to vector<8x128xf32>
    %154 = arith.addf %0, %153 : vector<8x128xf32>
    %cst_36 = arith.constant 0.000000e+00 : f32
    %155 = vector.broadcast %cst_36 : f32 to vector<8x128xf32>
    %156 = arith.maximumf %154, %155 : vector<8x128xf32>
    %157 = arith.addf %145, %156 : vector<8x128xf32>
    %c9_37 = arith.constant 9 : index
    %158 = memref.load %arg3[%c9_37] : memref<15xf32, #tpu.memory_space<smem>>
    %159 = vector.broadcast %158 : f32 to vector<8x128xf32>
    %160 = arith.addf %0, %159 : vector<8x128xf32>
    %cst_38 = arith.constant 0.000000e+00 : f32
    %161 = vector.broadcast %cst_38 : f32 to vector<8x128xf32>
    %162 = arith.maximumf %160, %161 : vector<8x128xf32>
    %163 = arith.addf %151, %162 : vector<8x128xf32>
    %c10_39 = arith.constant 10 : index
    %164 = memref.load %arg3[%c10_39] : memref<15xf32, #tpu.memory_space<smem>>
    %165 = vector.broadcast %164 : f32 to vector<8x128xf32>
    %166 = arith.addf %0, %165 : vector<8x128xf32>
    %cst_40 = arith.constant 0.000000e+00 : f32
    %167 = vector.broadcast %cst_40 : f32 to vector<8x128xf32>
    %168 = arith.maximumf %166, %167 : vector<8x128xf32>
    %169 = arith.addf %157, %168 : vector<8x128xf32>
    %c11_41 = arith.constant 11 : index
    %170 = memref.load %arg3[%c11_41] : memref<15xf32, #tpu.memory_space<smem>>
    %171 = vector.broadcast %170 : f32 to vector<8x128xf32>
    %172 = arith.addf %0, %171 : vector<8x128xf32>
    %cst_42 = arith.constant 0.000000e+00 : f32
    %173 = vector.broadcast %cst_42 : f32 to vector<8x128xf32>
    %174 = arith.maximumf %172, %173 : vector<8x128xf32>
    %175 = arith.addf %163, %174 : vector<8x128xf32>
    %c12_43 = arith.constant 12 : index
    %176 = memref.load %arg3[%c12_43] : memref<15xf32, #tpu.memory_space<smem>>
    %177 = vector.broadcast %176 : f32 to vector<8x128xf32>
    %178 = arith.addf %0, %177 : vector<8x128xf32>
    %cst_44 = arith.constant 0.000000e+00 : f32
    %179 = vector.broadcast %cst_44 : f32 to vector<8x128xf32>
    %180 = arith.maximumf %178, %179 : vector<8x128xf32>
    %181 = arith.addf %169, %180 : vector<8x128xf32>
    %c13_45 = arith.constant 13 : index
    %182 = memref.load %arg3[%c13_45] : memref<15xf32, #tpu.memory_space<smem>>
    %183 = vector.broadcast %182 : f32 to vector<8x128xf32>
    %184 = arith.addf %0, %183 : vector<8x128xf32>
    %cst_46 = arith.constant 0.000000e+00 : f32
    %185 = vector.broadcast %cst_46 : f32 to vector<8x128xf32>
    %186 = arith.maximumf %184, %185 : vector<8x128xf32>
    %187 = arith.addf %175, %186 : vector<8x128xf32>
    %c14_47 = arith.constant 14 : index
    %188 = memref.load %arg3[%c14_47] : memref<15xf32, #tpu.memory_space<smem>>
    %189 = vector.broadcast %188 : f32 to vector<8x128xf32>
    %190 = arith.addf %0, %189 : vector<8x128xf32>
    %cst_48 = arith.constant 0.000000e+00 : f32
    %191 = vector.broadcast %cst_48 : f32 to vector<8x128xf32>
    %192 = arith.maximumf %190, %191 : vector<8x128xf32>
    %193 = arith.addf %181, %192 : vector<8x128xf32>
    %194 = arith.addf %103, %97 : vector<8x128xf32>
    %195 = arith.addf %193, %187 : vector<8x128xf32>
    %196 = arith.subf %194, %195 : vector<8x128xf32>
    %cst_49 = arith.constant 0.176776692 : f32
    %197 = vector.broadcast %cst_49 : f32 to vector<8x128xf32>
    %198 = arith.mulf %197, %196 : vector<8x128xf32>
    %c0_50 = arith.constant 0 : index
    %c0_51 = arith.constant 0 : index
    %199 = vector.load %arg4[%c0_50, %c0_51] : memref<8x128xf32, #tpu.memory_space<vmem>>, vector<8x128xf32>
    tpu.vector_store %arg4[%c0_50, %c0_51], %198 {strides = array<i32>} : memref<8x128xf32, #tpu.memory_space<vmem>>, vector<8x128xf32>,
    return
  }
  func.func @transform_0(%arg0: i32) -> (i32, i32) {
    %c0_i32 = arith.constant 0 : i32
    %c0_i32_0 = arith.constant 0 : i32
    return %arg0, %c0_i32 : i32, i32
  }
  func.func @transform_1(%arg0: i32) -> i32 {
    %c0_i32 = arith.constant 0 : i32
    %c0_i32_0 = arith.constant 0 : i32
    return %c0_i32 : i32
  }
  func.func @transform_2(%arg0: i32) -> i32 {
    %c0_i32 = arith.constant 0 : i32
    %c0_i32_0 = arith.constant 0 : i32
    return %c0_i32 : i32
  }
  func.func @transform_3(%arg0: i32) -> (i32, i32) {
    %c0_i32 = arith.constant 0 : i32
    %c0_i32_0 = arith.constant 0 : i32
    return %arg0, %c0_i32 : i32, i32
  }
}

</mosaic_0001>

<llo_original>
// kernel: tpu_custom_call.1
$region0: #{tpu_custom_call.1}
  #allocation0 [shape = 'u32[]', space=smem, size = 0x4, offset = 0x4, fixed_abs, tag = 'smem constant byte address 0x4 - core index']
  #allocation1 [shape = 'u32[144,128]{1,0:T(1,128)}', space=vmem, size = 0x12000, scoped, tag = 'internal scratch']
  %s0 = inlined_call_operand.hbm [shape: f32[10,128], index: 0, kind: input, shape index: {}]
  %s1 = inlined_call_operand.vmem [shape: f32[17], index: 1, kind: input, shape index: {}]
  %s2 = inlined_call_operand.vmem [shape: f32[15], index: 2, kind: input, shape index: {}]
  %s3 = inlined_call_operand.hbm [shape: f32[10,128], index: 3, kind: output, shape index: {}]
  %s4 = sld [smem:[#allocation0]]
  $region57: #{tpu_custom_call.1} parent=0
    _
  %s6 = ssub.s32 1, %s4
  %s7 = scalar_select 0, %s6, %s4
  $region1: #{tpu_custom_call.1} parent=0
    #allocation2 [shape = 'u8[8192]{0}', space=vmem, size = 0x2000, scoped, tag = 'input window, operand 0']
    #allocation3 [shape = 's32[2]{0}', space=sflag, size = 0x8, scoped, tag = 'scoped memory for tpu_custom_call.1']
    #allocation4 [shape = 's32[2]{0}', space=sflag, size = 0x8, scoped, tag = 'scoped memory for tpu_custom_call.1']
    #allocation5 [shape = 's32[2]{0}', space=sflag, size = 0x8, scoped, tag = 'scoped memory for tpu_custom_call.1']
    #allocation6 [shape = 'u8[512]{0}', space=smem, size = 0x200, scoped, tag = 'input window, operand 1, single buffered']
    #allocation7 [shape = 'u8[512]{0}', space=smem, size = 0x200, scoped, tag = 'input window, operand 2, single buffered']
    #allocation8 [shape = 's32[1]{0}', space=sflag, size = 0x4, scoped, tag = 'scoped memory for tpu_custom_call.1']
    #allocation9 [shape = 'u8[8192]{0}', space=vmem, size = 0x2000, scoped, tag = 'output window, operand 0']
    %8 = vsyncpa [#allocation3], 0
    %s9 = scalar_lea.sflag [#allocation3], 1
    %10 = vsyncpa %s9, 0
    %11 = vsyncpa [#allocation5], 0
    %12 = vsyncpa [#allocation8], 0
    %13 = vsyncpa [#allocation4], 0
    %s14 = scalar_lea.sflag [#allocation4], 1
    %15 = vsyncpa %s14, 0
    loop: start=0, step=1, limit=4
    $region2: #{tpu_custom_call.1} parent=1 // loop_pre_header
      _
    $region3: #{tpu_custom_call.1} parent=1 // loop_header
      %s17 = sphi 0, %s21
      %p18 = scmp.ge.s32.totalorder %s17, 4
      %s27 = sphi 0, %s29
      %s30 = sphi 0, %s27
      %s31 = sphi 0, %s30
      %s47 = sphi 0, %s31
      %s51 = sphi 0, %s51
      %s53 = sphi 0, %s51
      %s54 = sphi 0, %s53
      %s68 = sphi 0, %s54
      %s72 = sphi 0, %s72
      %s74 = sphi 0, %s72
      %s75 = sphi 0, %s74
      %s89 = sphi 0, %s75
      %s95 = sphi 0, %s97
      %s98 = sphi 0, %s95
      %s99 = sphi 0, %s98
      %s115 = sphi 0, %s99
    $region4: #{tpu_custom_call.1} parent=1 // loop_header_branch
      %20 = sbr.rel (%p18) target = $region8
    $region5: #{tpu_custom_call.1} parent=1 // loop_body
      %s22 = ssub.s32 %s17, 1
      %s23 = ssub.s32 %s17, 2
      %s24 = sadd.s32 %s17, 1
      %s25 = ssub.s32 %s17, %s24
      %p26 = scmp.eq.s32.totalorder %s25, 0
      %s28 = sadd.s32 %s27, 1
      %s29 = scalar_select %p26, %s27, %s28
      %p32 = pneg %p26
      %p33 = scmp.eq.s32.totalorder %s17, 1
      %p34 = por %p32, %p33
      %p35 = scmp.ne.s32.totalorder %s27, %s30
      %p36 = scmp.eq.s32.totalorder %s17, 0
      %p37 = por %p35, %p36
      %p38 = scmp.ne.s32.totalorder %s27, %s30
      %p39 = scmp.eq.s32.totalorder %s22, 1
      %p40 = por %p38, %p39
      %p41 = scmp.ne.s32.totalorder %s30, %s31
      %p42 = scmp.eq.s32.totalorder %s22, 0
      %p43 = por %p41, %p42
      %p44 = scmp.ne.s32.totalorder %s30, %s31
      %p45 = scmp.eq.s32.totalorder %s23, 1
      %p46 = por %p44, %p45
      %p48 = scmp.ne.s32.totalorder %s31, %s47
      %p49 = scmp.eq.s32.totalorder %s23, 0
      %p50 = por %p48, %p49
      %s52 = sadd.s32 %s51, 1
      %p55 = scmp.eq.s32.totalorder %s17, 1
      %p56 = scmp.ne.s32.totalorder %s51, %s53
      %p57 = scmp.eq.s32.totalorder %s17, 0
      %p58 = por %p56, %p57
      %p59 = scmp.ne.s32.totalorder %s51, %s53
      %p60 = scmp.eq.s32.totalorder %s22, 1
      %p61 = por %p59, %p60
      %p62 = scmp.ne.s32.totalorder %s53, %s54
      %p63 = scmp.eq.s32.totalorder %s22, 0
      %p64 = por %p62, %p63
      %p65 = scmp.ne.s32.totalorder %s53, %s54
      %p66 = scmp.eq.s32.totalorder %s23, 1
      %p67 = por %p65, %p66
      %p69 = scmp.ne.s32.totalorder %s54, %s68
      %p70 = scmp.eq.s32.totalorder %s23, 0
      %p71 = por %p69, %p70
      %s73 = sadd.s32 %s72, 1
      %p76 = scmp.eq.s32.totalorder %s17, 1
      %p77 = scmp.ne.s32.totalorder %s72, %s74
      %p78 = scmp.eq.s32.totalorder %s17, 0
      %p79 = por %p77, %p78
      %p80 = scmp.ne.s32.totalorder %s72, %s74
      %p81 = scmp.eq.s32.totalorder %s22, 1
      %p82 = por %p80, %p81
      %p83 = scmp.ne.s32.totalorder %s74, %s75
      %p84 = scmp.eq.s32.totalorder %s22, 0
      %p85 = por %p83, %p84
      %p86 = scmp.ne.s32.totalorder %s74, %s75
      %p87 = scmp.eq.s32.totalorder %s23, 1
      %p88 = por %p86, %p87
      %p90 = scmp.ne.s32.totalorder %s75, %s89
      %p91 = scmp.eq.s32.totalorder %s23, 0
      %p92 = por %p90, %p91
      %s93 = ssub.s32 %s17, %s24
      %p94 = scmp.eq.s32.totalorder %s93, 0
      %s96 = sadd.s32 %s95, 1
      %s97 = scalar_select %p94, %s95, %s96
      %p100 = pneg %p94
      %p101 = scmp.eq.s32.totalorder %s17, 1
      %p102 = por %p100, %p101
      %p103 = scmp.ne.s32.totalorder %s95, %s98
      %p104 = scmp.eq.s32.totalorder %s17, 0
      %p105 = por %p103, %p104
      %p106 = scmp.ne.s32.totalorder %s95, %s98
      %p107 = scmp.eq.s32.totalorder %s22, 1
      %p108 = por %p106, %p107
      %p109 = scmp.ne.s32.totalorder %s98, %s99
      %p110 = scmp.eq.s32.totalorder %s22, 0
      %p111 = por %p109, %p110
      %p112 = scmp.ne.s32.totalorder %s98, %s99
      %p113 = scmp.eq.s32.totalorder %s23, 1
      %p114 = por %p112, %p113
      %p116 = scmp.ne.s32.totalorder %s99, %s115
      %p117 = scmp.eq.s32.totalorder %s23, 0
      %p118 = por %p116, %p117
      %p119 = scmp.le.s32.totalorder 1, %s17
      %p120 = scmp.lt.s32.totalorder %s17, 3
      %p121 = pnand %p119, %p120
      %p122 = pneg %p121
      // Predicated region
      $region9: #{tpu_custom_call.1} parent=5 // pred_check
        _
      $region10: #{tpu_custom_call.1} parent=5 // pred_check_branch
        %124 = sbr.rel (%p121) target = $region12
      $region11: #{tpu_custom_call.1} parent=5 // pred_region
        %s125 = ssub.s32 %s17, 1
        // Predicated region
        $region13: #{tpu_custom_call.1} parent=11 // pred_check
          %p126 = pneg %p64
        $region14: #{tpu_custom_call.1} parent=11 // pred_check_branch
          %128 = sbr.rel (%p126) target = $region16
        $region15: #{tpu_custom_call.1} parent=11 // pred_region
          %s130 = ssub.s32 16, 16
          %131 = vsyncadd [#allocation5], %s130
          %s133 = sshll.u32 %s1, 4
          %s134 = int_to_ptr.vmem [resolvable:$true] %s133
          %136 = dma.vmem_to_smem %s134, 16, [#allocation6], [#allocation5]
        $region16: #{tpu_custom_call.1} parent=11 // pred_fallthru
          _
        // Predicated region
        $region17: #{tpu_custom_call.1} parent=11 // pred_check
          %p137 = pneg %p85
        $region18: #{tpu_custom_call.1} parent=11 // pred_check_branch
          %139 = sbr.rel (%p137) target = $region20
        $region19: #{tpu_custom_call.1} parent=11 // pred_region
          %s141 = ssub.s32 16, 16
          %142 = vsyncadd [#allocation8], %s141
          %s144 = sshll.u32 %s2, 4
          %s145 = int_to_ptr.vmem [resolvable:$true] %s144
          %147 = dma.vmem_to_smem %s145, 16, [#allocation7], [#allocation8]
        $region20: #{tpu_custom_call.1} parent=11 // pred_fallthru
          _
      $region12: #{tpu_custom_call.1} parent=5 // pred_fallthru
        _
      %p148 = scmp.lt.s32.totalorder %s17, 2
      // Predicated region
      $region21: #{tpu_custom_call.1} parent=5 // pred_check
        %p149 = pneg %p148
      $region22: #{tpu_custom_call.1} parent=5 // pred_check_branch
        %151 = sbr.rel (%p149) target = $region24
      $region23: #{tpu_custom_call.1} parent=5 // pred_region
        // Predicated region
        $region25: #{tpu_custom_call.1} parent=23 // pred_check
          %p152 = pneg %p37
        $region26: #{tpu_custom_call.1} parent=23 // pred_check_branch
          %154 = sbr.rel (%p152) target = $region28
        $region27: #{tpu_custom_call.1} parent=23 // pred_region
          %s155 = sand.u32 %s27, 1
          %s156 = scalar_lea.sflag [#allocation3], %s155
          %s157 = sand.u32 %s27, 1
          %s158 = smul.addr %s157, 8
          %s159 = scalar_lea.vmem [#allocation2], %s158
          %s161 = ssub.s32 128, 128
          %162 = vsyncadd %s156, %s161
          %s163 = smul.addr %s17, 128
          %s164 = scalar_lea.hbm %s0, %s163
          %s166 = sshll.u32 %s159, 4
          %s167 = int_to_ptr.vmem [resolvable:$true] %s166
          %169 = dma.hbm_to_vmem [thread:$0]  %s164, 128, %s167, %s156
        $region28: #{tpu_custom_call.1} parent=23 // pred_fallthru
          _
      $region24: #{tpu_custom_call.1} parent=5 // pred_fallthru
        _
      %p170 = scmp.le.s32.totalorder 1, %s17
      %p171 = scmp.lt.s32.totalorder %s17, 3
      %p172 = pnand %p170, %p171
      %p173 = pneg %p172
      // Predicated region
      $region29: #{tpu_custom_call.1} parent=5 // pred_check
        _
      $region30: #{tpu_custom_call.1} parent=5 // pred_check_branch
        %175 = sbr.rel (%p172) target = $region32
      $region31: #{tpu_custom_call.1} parent=5 // pred_region
        %s176 = ssub.s32 %s17, 1
        %s177 = sand.u32 %s30, 1
        %s178 = scalar_lea.sflag [#allocation3], %s177
        %s179 = sand.u32 %s30, 1
        %s180 = smul.addr %s179, 8
        %s181 = scalar_lea.vmem [#allocation2], %s180
        // Predicated region
        $region33: #{tpu_custom_call.1} parent=31 // pred_check
          %p182 = pneg %p43
        $region34: #{tpu_custom_call.1} parent=31 // pred_check_branch
          %184 = sbr.rel (%p182) target = $region36
        $region35: #{tpu_custom_call.1} parent=31 // pred_region
          %185 = dma.done %s178, 128
        $region36: #{tpu_custom_call.1} parent=31 // pred_fallthru
          _
        // Predicated region
        $region37: #{tpu_custom_call.1} parent=31 // pred_check
          %p186 = pneg %p64
        $region38: #{tpu_custom_call.1} parent=31 // pred_check_branch
          %188 = sbr.rel (%p186) target = $region40
        $region39: #{tpu_custom_call.1} parent=31 // pred_region
          %189 = dma.done [#allocation5], 16
        $region40: #{tpu_custom_call.1} parent=31 // pred_fallthru
          _
        // Predicated region
        $region41: #{tpu_custom_call.1} parent=31 // pred_check
          %p190 = pneg %p85
        $region42: #{tpu_custom_call.1} parent=31 // pred_check_branch
          %192 = sbr.rel (%p190) target = $region44
        $region43: #{tpu_custom_call.1} parent=31 // pred_region
          %193 = dma.done [#allocation8], 16
        $region44: #{tpu_custom_call.1} parent=31 // pred_fallthru
          _
        %194 = sfence
        %s195 = sand.u32 %s30, 1
        %s196 = scalar_lea.sflag [#allocation3], %s195
        %s197 = sand.u32 %s30, 1
        %s198 = smul.addr %s197, 8
        %s199 = scalar_lea.vmem [#allocation2], %s198
        %p200 = pneg %p43
        %p201 = pneg %p40
        %p202 = pneg %p64
        %p203 = pneg %p61
        %p204 = pneg %p85
        %p205 = pneg %p82
        %p206 = pneg %p111
        %p207 = pneg %p108
        %s208 = sand.u32 %s98, 1
        %s209 = scalar_lea.sflag [#allocation4], %s208
        %s210 = sand.u32 %s98, 1
        %s211 = smul.addr %s210, 8
        %s212 = scalar_lea.vmem [#allocation9], %s211
        %v213 = vld [vmem:[%s181] sm:$0xff]
        %s214 = sld [smem:[#allocation6]]
        %v215 = vstv %s214
        %v216 = vadd.f32 %v213, %v215
        %v217 = vmax.f32 %v216, 0.0
        %v218 = vadd.f32 %v217, 0.0
        %s219 = sld [smem:[#allocation6 + $0x1]]
        %v220 = vstv %s219
        %v221 = vadd.f32 %v213, %v220
        %v222 = vmax.f32 %v221, 0.0
        %v223 = vadd.f32 %v222, 0.0
        %s224 = sld [smem:[#allocation6 + $0x2]]
        %v225 = vstv %s224
        %v226 = vadd.f32 %v213, %v225
        %v227 = vmax.f32 %v226, 0.0
        %v228 = vadd.f32 %v218, %v227
        %s229 = sld [smem:[#allocation6 + $0x3]]
        %v230 = vstv %s229
        %v231 = vadd.f32 %v213, %v230
        %v232 = vmax.f32 %v231, 0.0
        %v233 = vadd.f32 %v223, %v232
        %s234 = sld [smem:[#allocation6 + $0x4]]
        %v235 = vstv %s234
        %v236 = vadd.f32 %v213, %v235
        %v237 = vmax.f32 %v236, 0.0
        %v238 = vadd.f32 %v228, %v237
        %s239 = sld [smem:[#allocation6 + $0x5]]
        %v240 = vstv %s239
        %v241 = vadd.f32 %v213, %v240
        %v242 = vmax.f32 %v241, 0.0
        %v243 = vadd.f32 %v233, %v242
        %s244 = sld [smem:[#allocation6 + $0x6]]
        %v245 = vstv %s244
        %v246 = vadd.f32 %v213, %v245
        %v247 = vmax.f32 %v246, 0.0
        %v248 = vadd.f32 %v238, %v247
        %s249 = sld [smem:[#allocation6 + $0x7]]
        %v250 = vstv %s249
        %v251 = vadd.f32 %v213, %v250
        %v252 = vmax.f32 %v251, 0.0
        %v253 = vadd.f32 %v243, %v252
        %s254 = sld [smem:[#allocation6 + $0x8]]
        %v255 = vstv %s254
        %v256 = vadd.f32 %v213, %v255
        %v257 = vmax.f32 %v256, 0.0
        %v258 = vadd.f32 %v248, %v257
        %s259 = sld [smem:[#allocation6 + $0x9]]
        %v260 = vstv %s259
        %v261 = vadd.f32 %v213, %v260
        %v262 = vmax.f32 %v261, 0.0
        %v263 = vadd.f32 %v253, %v262
        %s264 = sld [smem:[#allocation6 + $0xa]]
        %v265 = vstv %s264
        %v266 = vadd.f32 %v213, %v265
        %v267 = vmax.f32 %v266, 0.0
        %v268 = vadd.f32 %v258, %v267
        %s269 = sld [smem:[#allocation6 + $0xb]]
        %v270 = vstv %s269
        %v271 = vadd.f32 %v213, %v270
        %v272 = vmax.f32 %v271, 0.0
        %v273 = vadd.f32 %v263, %v272
        %s274 = sld [smem:[#allocation6 + $0xc]]
        %v275 = vstv %s274
        %v276 = vadd.f32 %v213, %v275
        %v277 = vmax.f32 %v276, 0.0
        %v278 = vadd.f32 %v268, %v277
        %s279 = sld [smem:[#allocation6 + $0xd]]
        %v280 = vstv %s279
        %v281 = vadd.f32 %v213, %v280
        %v282 = vmax.f32 %v281, 0.0
        %v283 = vadd.f32 %v273, %v282
        %s284 = sld [smem:[#allocation6 + $0xe]]
        %v285 = vstv %s284
        %v286 = vadd.f32 %v213, %v285
        %v287 = vmax.f32 %v286, 0.0
        %v288 = vadd.f32 %v278, %v287
        %s289 = sld [smem:[#allocation6 + $0xf]]
        %v290 = vstv %s289
        %v291 = vadd.f32 %v213, %v290
        %v292 = vmax.f32 %v291, 0.0
        %v293 = vadd.f32 %v283, %v292
        %s294 = sld [smem:[#allocation6 + $0x10]]
        %v295 = vstv %s294
        %v296 = vadd.f32 %v213, %v295
        %v297 = vmax.f32 %v296, 0.0
        %v298 = vadd.f32 %v288, %v297
        %s299 = sld [smem:[#allocation7]]
        %v300 = vstv %s299
        %v301 = vadd.f32 %v213, %v300
        %v302 = vmax.f32 %v301, 0.0
        %v303 = vadd.f32 %v302, 0.0
        %s304 = sld [smem:[#allocation7 + $0x1]]
        %v305 = vstv %s304
        %v306 = vadd.f32 %v213, %v305
        %v307 = vmax.f32 %v306, 0.0
        %v308 = vadd.f32 %v307, 0.0
        %s309 = sld [smem:[#allocation7 + $0x2]]
        %v310 = vstv %s309
        %v311 = vadd.f32 %v213, %v310
        %v312 = vmax.f32 %v311, 0.0
        %v313 = vadd.f32 %v303, %v312
        %s314 = sld [smem:[#allocation7 + $0x3]]
        %v315 = vstv %s314
        %v316 = vadd.f32 %v213, %v315
        %v317 = vmax.f32 %v316, 0.0
        %v318 = vadd.f32 %v308, %v317
        %s319 = sld [smem:[#allocation7 + $0x4]]
        %v320 = vstv %s319
        %v321 = vadd.f32 %v213, %v320
        %v322 = vmax.f32 %v321, 0.0
        %v323 = vadd.f32 %v313, %v322
        %s324 = sld [smem:[#allocation7 + $0x5]]
        %v325 = vstv %s324
        %v326 = vadd.f32 %v213, %v325
        %v327 = vmax.f32 %v326, 0.0
        %v328 = vadd.f32 %v318, %v327
        %s329 = sld [smem:[#allocation7 + $0x6]]
        %v330 = vstv %s329
        %v331 = vadd.f32 %v213, %v330
        %v332 = vmax.f32 %v331, 0.0
        %v333 = vadd.f32 %v323, %v332
        %s334 = sld [smem:[#allocation7 + $0x7]]
        %v335 = vstv %s334
        %v336 = vadd.f32 %v213, %v335
        %v337 = vmax.f32 %v336, 0.0
        %v338 = vadd.f32 %v328, %v337
        %s339 = sld [smem:[#allocation7 + $0x8]]
        %v340 = vstv %s339
        %v341 = vadd.f32 %v213, %v340
        %v342 = vmax.f32 %v341, 0.0
        %v343 = vadd.f32 %v333, %v342
        %s344 = sld [smem:[#allocation7 + $0x9]]
        %v345 = vstv %s344
        %v346 = vadd.f32 %v213, %v345
        %v347 = vmax.f32 %v346, 0.0
        %v348 = vadd.f32 %v338, %v347
        %s349 = sld [smem:[#allocation7 + $0xa]]
        %v350 = vstv %s349
        %v351 = vadd.f32 %v213, %v350
        %v352 = vmax.f32 %v351, 0.0
        %v353 = vadd.f32 %v343, %v352
        %s354 = sld [smem:[#allocation7 + $0xb]]
        %v355 = vstv %s354
        %v356 = vadd.f32 %v213, %v355
        %v357 = vmax.f32 %v356, 0.0
        %v358 = vadd.f32 %v348, %v357
        %s359 = sld [smem:[#allocation7 + $0xc]]
        %v360 = vstv %s359
        %v361 = vadd.f32 %v213, %v360
        %v362 = vmax.f32 %v361, 0.0
        %v363 = vadd.f32 %v353, %v362
        %s364 = sld [smem:[#allocation7 + $0xd]]
        %v365 = vstv %s364
        %v366 = vadd.f32 %v213, %v365
        %v367 = vmax.f32 %v366, 0.0
        %v368 = vadd.f32 %v358, %v367
        %s369 = sld [smem:[#allocation7 + $0xe]]
        %v370 = vstv %s369
        %v371 = vadd.f32 %v213, %v370
        %v372 = vmax.f32 %v371, 0.0
        %v373 = vadd.f32 %v363, %v372
        %v374 = vadd.f32 %v298, %v293
        %v375 = vadd.f32 %v373, %v368
        %v376 = vsub.f32 %v374, %v375
        %v377 = vmul.f32 %v376, 0.17677669
        %378 = vst [vmem:[%s212] sm:$0xff] %v377
        %s379 = sand.u32 %s98, 1
        %s380 = scalar_lea.sflag [#allocation4], %s379
        %s381 = sand.u32 %s98, 1
        %s382 = smul.addr %s381, 8
        %s383 = scalar_lea.vmem [#allocation9], %s382
        // Predicated region
        $region45: #{tpu_custom_call.1} parent=31 // pred_check
          %p384 = pneg %p108
        $region46: #{tpu_custom_call.1} parent=31 // pred_check_branch
          %386 = sbr.rel (%p384) target = $region48
        $region47: #{tpu_custom_call.1} parent=31 // pred_region
          %s388 = ssub.s32 128, 128
          %389 = vsyncadd %s380, %s388
          %s390 = smul.addr %s22, 128
          %s391 = scalar_lea.hbm %s3, %s390
          %s393 = sshll.u32 %s383, 4
          %s394 = int_to_ptr.vmem [resolvable:$true] %s393
          %396 = dma.vmem_to_hbm [thread:$0]  %s394, 128, %s391, %s380
        $region48: #{tpu_custom_call.1} parent=31 // pred_fallthru
          _
      $region32: #{tpu_custom_call.1} parent=5 // pred_fallthru
        _
      %p397 = scmp.le.s32.totalorder 2, %s17
      // Predicated region
      $region49: #{tpu_custom_call.1} parent=5 // pred_check
        %p398 = pneg %p397
      $region50: #{tpu_custom_call.1} parent=5 // pred_check_branch
        %400 = sbr.rel (%p398) target = $region52
      $region51: #{tpu_custom_call.1} parent=5 // pred_region
        %s401 = ssub.s32 %s17, 2
        // Predicated region
        $region53: #{tpu_custom_call.1} parent=51 // pred_check
          %p402 = pneg %p114
        $region54: #{tpu_custom_call.1} parent=51 // pred_check_branch
          %404 = sbr.rel (%p402) target = $region56
        $region55: #{tpu_custom_call.1} parent=51 // pred_region
          %s405 = sand.u32 %s99, 1
          %s406 = scalar_lea.sflag [#allocation4], %s405
          %s407 = sand.u32 %s99, 1
          %s408 = smul.addr %s407, 8
          %s409 = scalar_lea.vmem [#allocation9], %s408
          %410 = dma.done %s406, 128
        $region56: #{tpu_custom_call.1} parent=51 // pred_fallthru
          _
      $region52: #{tpu_custom_call.1} parent=5 // pred_fallthru
        _
    $region6: #{tpu_custom_call.1} parent=1 // loop_footer
      %s21 = sadd.s32 1, %s17
    $region7: #{tpu_custom_call.1} parent=1 // loop_footer_branch
      %16 = sbr.rel target = $region3
    $region8: #{tpu_custom_call.1} parent=1 // loop_exit
      _
    %411 = vsyncpa [#allocation3], 1
    %s412 = scalar_lea.sflag [#allocation3], 1
    %413 = vsyncpa %s412, 1
    %414 = vsyncpa [#allocation4], 1
    %s415 = scalar_lea.sflag [#allocation4], 1
    %416 = vsyncpa %s415, 1
    %417 = vsyncpa [#allocation5], 1
    %s418 = scalar_lea.sflag [#allocation5], 1
    %419 = vsyncpa %s418, 1
    %420 = vsyncpa [#allocation8], 1

</llo_original>
